<compile_context>
chip_gen: v7x
topology: tpu7x:2x2x1
jax: 0.10.0
libtpu: 0.0.40
codegen_flags: <defaults>
</compile_context>

<pallas_src>
import math

import jax
import jax.numpy as jnp
from jax import lax
from jax.experimental import pallas as pl
from jax.experimental.pallas import tpu as pltpu

_MIB = 1024 * 1024
_STEP_BYTES_TARGET = 8 * _MIB     # HBM bytes read per grid step (2 inputs, 1 buffer)
_SMALL_PROBLEM_BYTES = 2 * _MIB   # below this, plain jnp beats a kernel launch


def _round_up(x, m):
    return -(-x // m) * m


def _vmem_plan():
    """(vmem_limit_bytes, input_working_set_budget) sized per TPU generation."""
    try:
        cap = int(pltpu.get_tpu_info().vmem_capacity_bytes)
    except Exception:
        cap = 64 * _MIB
    if cap >= 100 * _MIB:            # v5e / v6e: 128 MiB VMEM
        return 96 * _MIB, 48 * _MIB
    return 48 * _MIB, 28 * _MIB      # v7x: 64 MiB per TensorCore (or unknown)


def _split_rows(rows0, cols0, pack):
    """Fold spatial into rows so the 'parallel' grid axis gets >= 2 row blocks."""
    k = 1
    while (rows0 * k < 2 * pack
           and cols0 % (2 * k) == 0
           and cols0 // (2 * k) >= 1024):
        k *= 2
    return k


def _plan_tiles(rows, cols, itemsize, vmem_budget):
    """Pick (rows_blk, tile_n, acc_w) under the (8,128) rules + VMEM/step budgets."""
    pack = max(8, 32 // itemsize)            # sublane packing: f32->8, bf16->16, i8->32
    acc_w = min(512, _round_up(cols, 128))   # lane-dense accumulator / output width
    rows_blk = pack

    by_budget = vmem_budget // (2 * 2 * rows_blk * itemsize)   # 2 inputs, dbl-buffered
    by_step = _STEP_BYTES_TARGET // (2 * rows_blk * itemsize)
    tmax = max(acc_w, (min(by_budget, by_step) // acc_w) * acc_w)

    cols_up = _round_up(cols, acc_w)
    if cols_up <= tmax:
        tile_n = cols_up
    else:
        nblk = -(-cols // tmax)
        tile_n = _round_up(-(-cols // nblk), acc_w)   # balance lane blocks (min tail)

    # Grow the row block while there is headroom and >= 2 row blocks remain.
    while (rows >= 4 * rows_blk
           and rows_blk <= 128
           and 2 * 2 * (2 * rows_blk) * tile_n * itemsize <= vmem_budget
           and 2 * (2 * rows_blk) * tile_n * itemsize <= _STEP_BYTES_TARGET):
        rows_blk *= 2

    return rows_blk, tile_n, acc_w


def _build_kernel(rows, cols, rows_blk, tile_n, acc_w, mask_rows, mask_cols):
    n_chunks = tile_n // acc_w

    def kernel(p_ref, y_ref, out_ref, acc_ref):
        @pl.when(pl.program_id(1) == 0)
        def _init():
            acc_ref[...] = jnp.zeros_like(acc_ref)

        row_base = pl.program_id(0) * rows_blk
        col_base = pl.program_id(1) * tile_n

        def chunk(c, carry):
            off = pl.multiple_of(c * acc_w, acc_w)
            p = p_ref[:, pl.ds(off, acc_w)].astype(jnp.float32)
            t = y_ref[:, pl.ds(off, acc_w)].astype(jnp.float32)
            d = p - t
            sq = d * d
            if mask_cols or mask_rows:
                mask = None
                if mask_cols:
                    cid = lax.broadcasted_iota(jnp.int32, (rows_blk, acc_w), 1)
                    mask = (col_base + off + cid) < cols
                if mask_rows:
                    rid = lax.broadcasted_iota(jnp.int32, (rows_blk, acc_w), 0)
                    rmask = (row_base + rid) < rows
                    mask = rmask if mask is None else (mask & rmask)
                sq = jnp.where(mask, sq, 0.0)
            acc_ref[...] += sq
            return carry

        lax.fori_loop(0, n_chunks, chunk, 0,
                      unroll=True if n_chunks <= 8 else 4)

        @pl.when(pl.program_id(1) == pl.num_programs(1) - 1)
        def _fin():
            out_ref[...] = acc_ref[...]

    return kernel


def _per_row_sq_err_sums(p2d, y2d):
    """p2d, y2d: (R, N). Returns (R, acc_w) f32 partial sums; sum(-1) == per-row SSE."""
    rows, cols = p2d.shape
    itemsize = jnp.dtype(p2d.dtype).itemsize
    vmem_limit, vmem_budget = _vmem_plan()
    rows_blk, tile_n, acc_w = _plan_tiles(rows, cols, itemsize, vmem_budget)

    rows_pad = _round_up(rows, rows_blk)
    n_row_blocks = rows_pad // rows_blk
    n_lane_blocks = -(-cols // tile_n)
    mask_rows = (rows % rows_blk) != 0
    mask_cols = (cols % tile_n) != 0

    kernel = _build_kernel(rows, cols, rows_blk, tile_n, acc_w, mask_rows, mask_cols)

    cost = pl.CostEstimate(
        flops=3 * rows * cols,
        transcendentals=0,
        bytes_accessed=2 * rows * cols * itemsize + rows_pad * acc_w * 4,
    )

    out = pl.pallas_call(
        kernel,
        out_shape=jax.ShapeDtypeStruct((rows_pad, acc_w), jnp.float32),
        grid_spec=pltpu.PrefetchScalarGridSpec(
            num_scalar_prefetch=0,
            grid=(n_row_blocks, n_lane_blocks),
            in_specs=[
                pl.BlockSpec((rows_blk, tile_n), lambda r, l: (r, l)),
                pl.BlockSpec((rows_blk, tile_n), lambda r, l: (r, l)),
            ],
            out_specs=pl.BlockSpec((rows_blk, acc_w), lambda r, l: (r, 0)),
            scratch_shapes=[pltpu.VMEM((rows_blk, acc_w), jnp.float32)],
        ),
        compiler_params=pltpu.CompilerParams(
            dimension_semantics=("parallel", "arbitrary"),
            vmem_limit_bytes=vmem_limit,
        ),
        cost_estimate=cost,
    )(p2d, y2d)
    return out[:rows]


def cycif_loss_forward(pred, y, split="train", weights=None, channel_names=None,
                       force_pallas=False):
    """Forward pass of cycif_loss (MSE). pred, y: (B, C, ...). Returns (loss, log)."""
    assert pred.shape == y.shape
    B, C = pred.shape[0], pred.shape[1]
    cols0 = math.prod(pred.shape[2:]) if pred.ndim > 2 else 1
    rows0 = B * C
    itemsize = jnp.dtype(pred.dtype).itemsize
    pack = max(8, 32 // itemsize)

    k = _split_rows(rows0, cols0, pack) if cols0 >= 128 else 1
    rows, cols = rows0 * k, cols0 // k
    big_enough = force_pallas or (rows0 * cols0 * itemsize >= _SMALL_PROBLEM_BYTES)
    use_pallas = big_enough and cols >= 128 and rows >= pack

    if use_pallas:
        # Free reshapes (no transpose, no extra HBM traffic): NCHW -> (B*C*k, HW/k).
        p2d = pred.reshape(rows, cols)
        y2d = y.reshape(rows, cols)
        partial_sums = _per_row_sq_err_sums(p2d, y2d)          # (rows, acc_w)
        row_sums = jnp.sum(partial_sums, axis=-1)              # (rows,)
        per_bc = row_sums.reshape(rows0, k).sum(axis=-1).reshape(B, C)
        per_channel_mean = per_bc.sum(axis=0) / jnp.float32(B * cols0)   # (C,)
    else:
        d = pred.astype(jnp.float32) - y.astype(jnp.float32)
        red_axes = (0,) + tuple(range(2, pred.ndim))
        per_channel_mean = jnp.mean(d * d, axis=red_axes)      # (C,)

    if weights is not None:
        # TODO(synk): PyTorch broadcasts `weights` over the trailing spatial dim of the
        # un-reduced (C,H,W) loss; here weights are applied per-channel (len == C).
        per_channel_mean = per_channel_mean * jnp.asarray(weights, jnp.float32)

    total = jnp.mean(per_channel_mean)

    log = {}
    for i in range(C):
        name = i if channel_names is None else channel_names[i]
        log[f"{split}/{name}_loss"] = per_channel_mean[i]
    log[f"{split}/total_loss"] = total
    return total, log


def _check(pred, y, force_pallas=False):
    loss, log = cycif_loss_forward(pred, y, split="train", force_pallas=force_pallas)
    loss = jax.block_until_ready(loss)
    log = jax.tree_util.tree_map(jax.block_until_ready, log)

    d = pred.astype(jnp.float32) - y.astype(jnp.float32)
    ref_pc = jnp.mean(d * d, axis=(0,) + tuple(range(2, pred.ndim)))
    ref_total = jnp.mean(ref_pc)
    assert jnp.allclose(loss, ref_total, rtol=1e-4, atol=1e-6), (loss, ref_total)
    for i in range(pred.shape[1]):
        assert jnp.allclose(log[f"train/{i}_loss"], ref_pc[i], rtol=1e-4, atol=1e-6)
    return loss


if __name__ == "__main__":
    key = jax.random.PRNGKey(0)
    k1, k2, k3, k4, k5, k6 = jax.random.split(key, 6)

    # Small shape implied by the module; forced through the Pallas path.
    B, C, H, W = 2, 4, 16, 16
    pred = jax.random.normal(k1, (B, C, H, W), dtype=jnp.float32)
    y = jax.random.normal(k2, (B, C, H, W), dtype=jnp.float32)
    _check(pred, y, force_pallas=True)

    # Non-128-aligned spatial size: exercises row splitting + in-kernel tail masking.
    pred2 = jax.random.normal(k3, (2, 4, 100, 100), dtype=jnp.float32)
    y2 = jax.random.normal(k4, (2, 4, 100, 100), dtype=jnp.float32)
    _check(pred2, y2, force_pallas=True)

    # Odd tiny shape: routed to the plain-jnp fallback (R < sublane packing).
    pred3 = jax.random.normal(k5, (2, 3, 17, 19), dtype=jnp.float32)
    y3 = jax.random.normal(k6, (2, 3, 17, 19), dtype=jnp.float32)
    _check(pred3, y3)

    print("KERNEL_OK")
</pallas_src>

<mosaic_0001>
module attributes {stable_mosaic.version = 11 : i64} {
  func.func @kernel(%arg0: i32, %arg1: i32, %arg2: memref<8x256xf32, #tpu.memory_space<vmem>>, %arg3: memref<8x256xf32, #tpu.memory_space<vmem>>, %arg4: memref<8x256xf32, #tpu.memory_space<vmem>>, %arg5: memref<8x256xf32, #tpu.memory_space<vmem>>) attributes {dimension_semantics = [#tpu.dimension_semantics<parallel>, #tpu.dimension_semantics<arbitrary>], iteration_bounds = array<i64: 1, 1>, scalar_prefetch = 0 : i64, scratch_operands = 1 : i64, tpu.core_type = #tpu.core_type<tc>, window_params = [{transform_indices = @transform_0, window_bounds = array<i64: 8, 256>}, {transform_indices = @transform_1, window_bounds = array<i64: 8, 256>}, {transform_indices = @transform_2, window_bounds = array<i64: 8, 256>}]} {
    %c0_i32 = arith.constant 0 : i32
    %0 = arith.cmpi eq, %arg1, %c0_i32 : i32
    %1 = arith.extui %0 : i1 to i32
    %c0_i32_0 = arith.constant 0 : i32
    %2 = arith.cmpi ne, %1, %c0_i32_0 : i32
    scf.if %2 {
      %cst = arith.constant 0.000000e+00 : f32
      %17 = vector.broadcast %cst : f32 to vector<8x256xf32>
      %c0_9 = arith.constant 0 : index
      %c0_10 = arith.constant 0 : index
      %18 = vector.load %arg5[%c0_9, %c0_10] : memref<8x256xf32, #tpu.memory_space<vmem>>, vector<8x256xf32>
      tpu.vector_store %arg5[%c0_9, %c0_10], %17 {strides = array<i32>} : memref<8x256xf32, #tpu.memory_space<vmem>>, vector<8x256xf32>,
    } else {
    }
    %c0_i32_1 = arith.constant 0 : i32
    %c256_i32 = arith.constant 256 : i32
    %3 = arith.muli %c0_i32_1, %c256_i32 : i32
    %4 = tpu.assume_multiple %3, 256 : i32
    %c0 = arith.constant 0 : index
    %5 = arith.index_cast %4 : i32 to index
    %6 = vector.load %arg2[%c0, %5] : memref<8x256xf32, #tpu.memory_space<vmem>>, vector<8x256xf32>
    %c0_2 = arith.constant 0 : index
    %7 = arith.index_cast %4 : i32 to index
    %8 = vector.load %arg3[%c0_2, %7] : memref<8x256xf32, #tpu.memory_space<vmem>>, vector<8x256xf32>
    %9 = arith.subf %6, %8 : vector<8x256xf32>
    %10 = arith.mulf %9, %9 : vector<8x256xf32>
    %c0_3 = arith.constant 0 : index
    %c0_4 = arith.constant 0 : index
    %11 = vector.load %arg5[%c0_3, %c0_4] : memref<8x256xf32, #tpu.memory_space<vmem>>, vector<8x256xf32>
    %12 = arith.addf %11, %10 : vector<8x256xf32>
    %c0_5 = arith.constant 0 : index
    %c0_6 = arith.constant 0 : index
    %13 = vector.load %arg5[%c0_5, %c0_6] : memref<8x256xf32, #tpu.memory_space<vmem>>, vector<8x256xf32>
    tpu.vector_store %arg5[%c0_5, %c0_6], %12 {strides = array<i32>} : memref<8x256xf32, #tpu.memory_space<vmem>>, vector<8x256xf32>,
    %c1_i32 = arith.constant 1 : i32
    %c0_i32_7 = arith.constant 0 : i32
    %14 = arith.cmpi eq, %arg1, %c0_i32_7 : i32
    %15 = arith.extui %14 : i1 to i32
    %c0_i32_8 = arith.constant 0 : i32
    %16 = arith.cmpi ne, %15, %c0_i32_8 : i32
    scf.if %16 {
      %c0_9 = arith.constant 0 : index
      %c0_10 = arith.constant 0 : index
      %17 = vector.load %arg5[%c0_9, %c0_10] : memref<8x256xf32, #tpu.memory_space<vmem>>, vector<8x256xf32>
      %c0_11 = arith.constant 0 : index
      %c0_12 = arith.constant 0 : index
      %18 = vector.load %arg4[%c0_11, %c0_12] : memref<8x256xf32, #tpu.memory_space<vmem>>, vector<8x256xf32>
      tpu.vector_store %arg4[%c0_11, %c0_12], %17 {strides = array<i32>} : memref<8x256xf32, #tpu.memory_space<vmem>>, vector<8x256xf32>,
    } else {
    }
    return
  }
  func.func @transform_0(%arg0: i32, %arg1: i32) -> (i32, i32) {
    %c0_i32 = arith.constant 0 : i32
    return %arg0, %arg1 : i32, i32
  }
  func.func @transform_1(%arg0: i32, %arg1: i32) -> (i32, i32) {
    %c0_i32 = arith.constant 0 : i32
    return %arg0, %arg1 : i32, i32
  }
  func.func @transform_2(%arg0: i32, %arg1: i32) -> (i32, i32) {
    %c0_i32 = arith.constant 0 : i32
    %c0_i32_0 = arith.constant 0 : i32
    return %arg0, %c0_i32 : i32, i32
  }
}

</mosaic_0001>

<llo_original>
// kernel: tpu_custom_call.1
$region0: #{tpu_custom_call.1}
  #allocation0 [shape = 'u32[]', space=smem, size = 0x4, offset = 0x4, fixed_abs, tag = 'smem constant byte address 0x4 - core index']
  #allocation1 [shape = 'u32[144,128]{1,0:T(1,128)}', space=vmem, size = 0x12000, scoped, tag = 'internal scratch']
  #allocation2 [shape = 'f32[8,256]{1,0:T(8,128)}', space=vmem, size = 0x2000, scoped, tag = 'scratch operand']
  %s0 = inlined_call_operand.hbm [shape: f32[8,256], index: 0, kind: input, shape index: {}]
  %s1 = inlined_call_operand.hbm [shape: f32[8,256], index: 1, kind: input, shape index: {}]
  %s2 = inlined_call_operand.hbm [shape: f32[8,256], index: 2, kind: output, shape index: {}]
  %s3 = sld [smem:[#allocation0]]
  $region34: #{tpu_custom_call.1} parent=0
    _
  %s5 = ssub.s32 1, %s3
  %s6 = scalar_select 0, %s5, %s3
  $region1: #{tpu_custom_call.1} parent=0
    #allocation3 [shape = 'u8[8192]{0}', space=vmem, size = 0x2000, scoped, tag = 'input window, operand 0, single buffered']
    #allocation4 [shape = 's32[1]{0}', space=sflag, size = 0x4, scoped, tag = 'scoped memory for tpu_custom_call.1']
    #allocation5 [shape = 's32[1]{0}', space=sflag, size = 0x4, scoped, tag = 'scoped memory for tpu_custom_call.1']
    #allocation6 [shape = 'u8[8192]{0}', space=vmem, size = 0x2000, scoped, tag = 'input window, operand 1, single buffered']
    #allocation7 [shape = 's32[1]{0}', space=sflag, size = 0x4, scoped, tag = 'scoped memory for tpu_custom_call.1']
    #allocation8 [shape = 'u8[8192]{0}', space=vmem, size = 0x2000, scoped, tag = 'output window, operand 0, single buffered']
    %7 = vsyncpa [#allocation4], 0
    %8 = vsyncpa [#allocation7], 0
    %9 = vsyncpa [#allocation5], 0
    // Predicated region
    $region2: #{tpu_custom_call.1} parent=1 // pred_check
      _
    $region3: #{tpu_custom_call.1} parent=1 // pred_check_branch
      %11 = sbr.rel (0) target = $region5
    $region4: #{tpu_custom_call.1} parent=1 // pred_region
      %s13 = ssub.s32 256, 256
      %14 = vsyncadd [#allocation4], %s13
      %s16 = sshll.u32 [#allocation3], 4
      %s17 = int_to_ptr.vmem [resolvable:$true] %s16
      %19 = dma.hbm_to_vmem [thread:$0]  %s0, 256, %s17, [#allocation4]
    $region5: #{tpu_custom_call.1} parent=1 // pred_fallthru
      _
    // Predicated region
    $region6: #{tpu_custom_call.1} parent=1 // pred_check
      _
    $region7: #{tpu_custom_call.1} parent=1 // pred_check_branch
      %21 = sbr.rel (0) target = $region9
    $region8: #{tpu_custom_call.1} parent=1 // pred_region
      %s23 = ssub.s32 256, 256
      %24 = vsyncadd [#allocation7], %s23
      %s26 = sshll.u32 [#allocation6], 4
      %s27 = int_to_ptr.vmem [resolvable:$true] %s26
      %29 = dma.hbm_to_vmem [thread:$0]  %s1, 256, %s27, [#allocation7]
    $region9: #{tpu_custom_call.1} parent=1 // pred_fallthru
      _
    // Predicated region
    $region10: #{tpu_custom_call.1} parent=1 // pred_check
      _
    $region11: #{tpu_custom_call.1} parent=1 // pred_check_branch
      %31 = sbr.rel (0) target = $region13
    $region12: #{tpu_custom_call.1} parent=1 // pred_region
      %32 = dma.done [#allocation4], 256
    $region13: #{tpu_custom_call.1} parent=1 // pred_fallthru
      _
    // Predicated region
    $region14: #{tpu_custom_call.1} parent=1 // pred_check
      _
    $region15: #{tpu_custom_call.1} parent=1 // pred_check_branch
      %34 = sbr.rel (0) target = $region17
    $region16: #{tpu_custom_call.1} parent=1 // pred_region
      %35 = dma.done [#allocation7], 256
    $region17: #{tpu_custom_call.1} parent=1 // pred_fallthru
      _
    %p36 = scmp.eq.s32.totalorder 0, 0
    // Predicated region
    $region18: #{tpu_custom_call.1} parent=1 // pred_check
      %p37 = pneg %p36
    $region19: #{tpu_custom_call.1} parent=1 // pred_check_branch
      %39 = sbr.rel (%p37) target = $region21
    $region20: #{tpu_custom_call.1} parent=1 // pred_region
      %40 = vst [vmem:[#allocation2] sm:$0xff] 0.0
      %41 = vst [vmem:[#allocation2 + $0x8] sm:$0xff] 0.0
    $region21: #{tpu_custom_call.1} parent=1 // pred_fallthru
      _
    %v42 = vld [vmem:[#allocation3] sm:$0xff]
    %v43 = vld [vmem:[#allocation3 + $0x8] sm:$0xff]
    %v44 = vld [vmem:[#allocation6] sm:$0xff]
    %v45 = vld [vmem:[#allocation6 + $0x8] sm:$0xff]
    %v46 = vsub.f32 %v42, %v44
    %v47 = vsub.f32 %v43, %v45
    %v48 = vmul.f32 %v46, %v46
    %v49 = vmul.f32 %v47, %v47
    %v50 = vld [vmem:[#allocation2] sm:$0xff]
    %v51 = vld [vmem:[#allocation2 + $0x8] sm:$0xff]
    %v52 = vadd.f32 %v50, %v48
    %v53 = vadd.f32 %v51, %v49
    %54 = vst [vmem:[#allocation2] sm:$0xff] %v52
    %55 = vst [vmem:[#allocation2 + $0x8] sm:$0xff] %v53
    // Predicated region
    $region22: #{tpu_custom_call.1} parent=1 // pred_check
      %p56 = pneg %p36
    $region23: #{tpu_custom_call.1} parent=1 // pred_check_branch
      %58 = sbr.rel (%p56) target = $region25
    $region24: #{tpu_custom_call.1} parent=1 // pred_region
      %v59 = vld [vmem:[#allocation2] sm:$0xff]
      %v60 = vld [vmem:[#allocation2 + $0x8] sm:$0xff]
      %61 = vst [vmem:[#allocation8] sm:$0xff] %v59
      %62 = vst [vmem:[#allocation8 + $0x8] sm:$0xff] %v60
    $region25: #{tpu_custom_call.1} parent=1 // pred_fallthru
      _
    // Predicated region
    $region26: #{tpu_custom_call.1} parent=1 // pred_check
      _
    $region27: #{tpu_custom_call.1} parent=1 // pred_check_branch
      %64 = sbr.rel (0) target = $region29
    $region28: #{tpu_custom_call.1} parent=1 // pred_region
      %s66 = ssub.s32 256, 256
      %67 = vsyncadd [#allocation5], %s66
      %s69 = sshll.u32 [#allocation8], 4
      %s70 = int_to_ptr.vmem [resolvable:$true] %s69
      %72 = dma.vmem_to_hbm [thread:$0]  %s70, 256, %s2, [#allocation5]
    $region29: #{tpu_custom_call.1} parent=1 // pred_fallthru
      _
    // Predicated region
    $region30: #{tpu_custom_call.1} parent=1 // pred_check
      _
    $region31: #{tpu_custom_call.1} parent=1 // pred_check_branch
      %74 = sbr.rel (0) target = $region33
    $region32: #{tpu_custom_call.1} parent=1 // pred_region
      %75 = dma.done [#allocation5], 256
    $region33: #{tpu_custom_call.1} parent=1 // pred_fallthru
      _
    %76 = vsyncpa [#allocation4], 1
    %77 = vsyncpa [#allocation7], 1
    %78 = vsyncpa [#allocation5], 1

</llo_original>
